<compile_context>
chip_gen: v6e
topology: v6e:2x2x1
jax: 0.10.0
libtpu: 0.0.40
codegen_flags: <defaults>
</compile_context>

<pallas_src>
import functools

import numpy as np
import jax
import jax.numpy as jnp
from jax import lax
from jax.experimental import pallas as pl
from jax.experimental.pallas import tpu as pltpu


# ----------------------------------------------------------------------------
# Pallas kernel: full CBAM forward for a chunk of Bb images.
# ----------------------------------------------------------------------------
def _cbam_kernel(x_ref, w1_ref, b1_ref, w2_ref, b2_ref, wa_ref, wm_ref, cb_ref,
                 o_ref, *, H, W, HW):
    f32 = jnp.float32
    Bb, C, HWp = x_ref.shape
    inv_hw = 1.0 / HW
    inv_c = 1.0 / C

    x = x_ref[...]                                        # (Bb, C, HWp) lane-dense

    # ---------------- channel attention ----------------
    # pooled columns, avg columns first then max columns -> one fused MLP pass
    cols = []
    for b in range(Bb):
        cols.append(jnp.sum(x[b], axis=1, keepdims=True) * inv_hw)   # (C, 1)
    for b in range(Bb):
        xb = x[b]
        if HWp != HW:                                     # pad lanes must not win the max
            lane = lax.broadcasted_iota(jnp.int32, (C, HWp), 1)
            xb = jnp.where(lane < HW, xb, -jnp.inf)
        cols.append(jnp.max(xb, axis=1, keepdims=True))              # (C, 1)
    P = jnp.concatenate(cols, axis=1)                     # (C, 2*Bb)

    hid = jnp.maximum(
        jnp.dot(w1_ref[...], P, preferred_element_type=f32) + b1_ref[...], 0.0)
    Z = jnp.dot(w2_ref[...], hid, preferred_element_type=f32) + b2_ref[...]
    ch = jax.nn.sigmoid(Z[:, :Bb] + Z[:, Bb:])            # (C, Bb) per-channel scale

    # ---------------- spatial attention ----------------
    # per-image channel-mean / channel-max of y = x*ch (y not kept live)
    arows, mrows = [], []
    for b in range(Bb):
        yb = x[b] * ch[:, b:b + 1]                        # (C, HWp) lane broadcast
        arows.append(jnp.sum(yb, axis=0, keepdims=True) * inv_c)     # (1, HWp)
        mrows.append(jnp.max(yb, axis=0, keepdims=True))              # (1, HWp)
    A = jnp.concatenate(arows, axis=0)                    # (Bb, HWp) avg map
    Mx = jnp.concatenate(mrows, axis=0)                   # (Bb, HWp) max map

    # 3x3 / stride-1 / pad-1 conv as 9 roll taps; wa/wm already hold
    # (conv weight * boundary mask) per tap, so edge/wrap reads contribute 0.
    wa = wa_ref[...]                                      # (9, HWp)
    wm = wm_ref[...]
    conv = jnp.zeros((Bb, HWp), f32)
    taps = [(dh, dw) for dh in (-1, 0, 1) for dw in (-1, 0, 1)]
    for t, (dh, dw) in enumerate(taps):
        delta = dh * W + dw                               # read offset: in[p + delta]
        shift = (-delta) % HWp
        a_sh = pltpu.roll(A, shift, axis=1) if shift else A
        m_sh = pltpu.roll(Mx, shift, axis=1) if shift else Mx
        conv = conv + wa[t:t + 1, :] * a_sh + wm[t:t + 1, :] * m_sh
    s = jax.nn.sigmoid(conv + cb_ref[0])                  # (Bb, HWp)

    # ---------------- output: x * ch * s ----------------
    for b in range(Bb):
        o_ref[b] = (x[b] * ch[:, b:b + 1] * s[b:b + 1, :]).astype(o_ref.dtype)


# ----------------------------------------------------------------------------
# Host-side: exact boundary masks for the 9 conv taps on the flat row-major map.
# ----------------------------------------------------------------------------
def _conv_tap_masks(H, W, HWp):
    HW = H * W
    m = np.zeros((9, HWp), np.float32)
    hh = np.arange(H)
    ww = np.arange(W)
    t = 0
    for dh in (-1, 0, 1):
        row_ok = (hh + dh >= 0) & (hh + dh < H)
        for dw in (-1, 0, 1):
            col_ok = (ww + dw >= 0) & (ww + dw < W)
            m[t, :HW] = (row_ok[:, None] & col_ok[None, :]).astype(np.float32).reshape(HW)
            t += 1
    return m


# ----------------------------------------------------------------------------
# Wrapper: layout plumbing, tap-map construction, batch-chunk sizing.
# ----------------------------------------------------------------------------
def cbam_pallas(x_nchw, p):
    """x_nchw: (B, C, H, W) float32; p: torch-shaped params. Returns (B, C, H, W)."""
    B, C, H, W = x_nchw.shape
    HW = H * W
    HWp = ((HW + 127) // 128) * 128                       # lane-dense spatial axis
    Cr = p['fc1_w'].shape[0]

    x_flat = x_nchw.reshape(B, C, HW).astype(jnp.float32)
    if HWp != HW:
        x_flat = jnp.pad(x_flat, ((0, 0), (0, 0), (0, HWp - HW)))

    # fold conv weights + boundary masks into per-tap lane maps (9, HWp)
    mask = jnp.asarray(_conv_tap_masks(H, W, HWp))
    w3 = p['conv_w'][0].reshape(2, 9).astype(jnp.float32)
    wa = mask * w3[0][:, None]                            # avg-channel taps
    wm = mask * w3[1][:, None]                            # max-channel taps

    w1 = p['fc1_w'][:, :, 0, 0].astype(jnp.float32)       # (Cr, C)
    b1 = p['fc1_b'].reshape(Cr, 1).astype(jnp.float32)
    w2 = p['fc2_w'][:, :, 0, 0].astype(jnp.float32)       # (C, Cr)
    b2 = p['fc2_b'].reshape(C, 1).astype(jnp.float32)
    cb = p['conv_b'].astype(jnp.float32)                  # (1,) -> SMEM scalar

    # batch-chunk size: largest divisor of B with a ~<=4 MiB input block,
    # capped at 8 and at B//2 so the grid length stays >= 2 (v7x dual TC).
    img_bytes = C * HWp * 4
    cap = max(1, min(8, (4 * 1024 * 1024) // max(img_bytes, 1),
                     B // 2 if B >= 2 else 1))
    Bb = 1
    for d in range(1, B + 1):
        if B % d == 0 and d <= cap:
            Bb = d
    grid = (B // Bb,)

    kernel = functools.partial(_cbam_kernel, H=H, W=W, HW=HW)

    def const(shape):
        # grid-invariant operand, whole-array block
        return pl.BlockSpec(shape, lambda i, n=len(shape): (0,) * n)

    out = pl.pallas_call(
        kernel,
        out_shape=jax.ShapeDtypeStruct((B, C, HWp), jnp.float32),
        grid=grid,
        in_specs=[
            pl.BlockSpec((Bb, C, HWp), lambda i: (i, 0, 0)),   # x chunk
            const((Cr, C)),                                    # fc1 weight
            const((Cr, 1)),                                    # fc1 bias
            const((C, Cr)),                                    # fc2 weight
            const((C, 1)),                                     # fc2 bias
            const((9, HWp)),                                   # conv taps (avg channel)
            const((9, HWp)),                                   # conv taps (max channel)
            pl.BlockSpec(memory_space=pltpu.MemorySpace.SMEM), # conv bias scalar
        ],
        out_specs=pl.BlockSpec((Bb, C, HWp), lambda i: (i, 0, 0)),
        compiler_params=pltpu.CompilerParams(
            dimension_semantics=("parallel",),
            vmem_limit_bytes=32 * 1024 * 1024),
    )(x_flat, w1, b1, w2, b2, wa, wm, cb)

    if HWp != HW:
        out = out[..., :HW]
    return out.reshape(B, C, H, W)


# ----------------------------------------------------------------------------
# Deterministic torch-shaped parameters + pure-JAX reference.
# ----------------------------------------------------------------------------
def init_params(key, C, reduction=16):
    Cr = max(C // reduction, 1)
    ks = jax.random.split(key, 6)

    def nrm(k, shape, s=0.3):
        return s * jax.random.normal(k, shape, dtype=jnp.float32)

    return {
        'fc1_w': nrm(ks[0], (Cr, C, 1, 1)),
        'fc1_b': nrm(ks[1], (Cr,), 0.1),
        'fc2_w': nrm(ks[2], (C, Cr, 1, 1)),
        'fc2_b': nrm(ks[3], (C,), 0.1),
        'conv_w': nrm(ks[4], (1, 2, 3, 3)),
        'conv_b': nrm(ks[5], (1,), 0.1),
    }


def reference_forward(x, p):
    # channel attention
    avg = jnp.mean(x, axis=(2, 3), keepdims=True)
    mx = jnp.max(x, axis=(2, 3), keepdims=True)

    def fc(v, w, b):
        return jnp.einsum('oc,bcij->boij', w[:, :, 0, 0], v) + b[None, :, None, None]

    a = jax.nn.relu(fc(avg, p['fc1_w'], p['fc1_b']))
    m = jax.nn.relu(fc(mx, p['fc1_w'], p['fc1_b']))
    a = fc(a, p['fc2_w'], p['fc2_b'])
    m = fc(m, p['fc2_w'], p['fc2_b'])
    ch = jax.nn.sigmoid(a + m)
    y = x * ch
    # spatial attention
    avg_s = jnp.mean(y, axis=1, keepdims=True)
    max_s = jnp.max(y, axis=1, keepdims=True)
    s_in = jnp.concatenate([avg_s, max_s], axis=1)
    conv = lax.conv_general_dilated(s_in, p['conv_w'], (1, 1), [(1, 1), (1, 1)],
                                    dimension_numbers=('NCHW', 'OIHW', 'NCHW'))
    conv = conv + p['conv_b'][None, :, None, None]
    return y * jax.nn.sigmoid(conv)


if __name__ == "__main__":
    B, C, H, W = 2, 32, 16, 16          # reduction=16 -> Cr=2
    key = jax.random.PRNGKey(0)
    kx, kp = jax.random.split(key)
    x = jax.random.normal(kx, (B, C, H, W), dtype=jnp.float32)
    params = init_params(kp, C, reduction=16)

    out = cbam_pallas(x, params)
    out = jax.block_until_ready(out)
    assert out.shape == (B, C, H, W)

    ref = reference_forward(x, params)
    err = float(jnp.max(jnp.abs(out - ref)))
    if not bool(jnp.allclose(out, ref, atol=1e-4, rtol=1e-4)):
        raise SystemExit("mismatch vs reference, max abs err = %e" % err)
    print("KERNEL_OK")
</pallas_src>

<mosaic_0001>
module attributes {stable_mosaic.version = 11 : i64} {
  func.func @_cbam_kernel(%arg0: i32, %arg1: memref<1x32x256xf32, #tpu.memory_space<vmem>>, %arg2: memref<2x32xf32, #tpu.memory_space<vmem>>, %arg3: memref<2x1xf32, #tpu.memory_space<vmem>>, %arg4: memref<32x2xf32, #tpu.memory_space<vmem>>, %arg5: memref<32x1xf32, #tpu.memory_space<vmem>>, %arg6: memref<9x256xf32, #tpu.memory_space<vmem>>, %arg7: memref<9x256xf32, #tpu.memory_space<vmem>>, %arg8: memref<1xf32, #tpu.memory_space<smem>>, %arg9: memref<1x32x256xf32, #tpu.memory_space<vmem>>) attributes {dimension_semantics = [#tpu.dimension_semantics<parallel>], iteration_bounds = array<i64: 2>, scalar_prefetch = 0 : i64, scratch_operands = 0 : i64, tpu.core_type = #tpu.core_type<tc>, window_params = [{transform_indices = @transform_0, window_bounds = array<i64: 1, 32, 256>}, {pipeline_mode = #tpu.pipeline_mode<synchronous>, transform_indices = @transform_1, window_bounds = array<i64: 2, 32>}, {pipeline_mode = #tpu.pipeline_mode<synchronous>, transform_indices = @transform_2, window_bounds = array<i64: 2, 1>}, {pipeline_mode = #tpu.pipeline_mode<synchronous>, transform_indices = @transform_3, window_bounds = array<i64: 32, 2>}, {pipeline_mode = #tpu.pipeline_mode<synchronous>, transform_indices = @transform_4, window_bounds = array<i64: 32, 1>}, {pipeline_mode = #tpu.pipeline_mode<synchronous>, transform_indices = @transform_5, window_bounds = array<i64: 9, 256>}, {pipeline_mode = #tpu.pipeline_mode<synchronous>, transform_indices = @transform_6, window_bounds = array<i64: 9, 256>}, {transform_indices = @transform_7, window_bounds = array<i64: 1>}, {transform_indices = @transform_8, window_bounds = array<i64: 1, 32, 256>}]} {
    %c0 = arith.constant 0 : index
    %c0_0 = arith.constant 0 : index
    %c0_1 = arith.constant 0 : index
    %0 = vector.load %arg1[%c0, %c0_0, %c0_1] : memref<1x32x256xf32, #tpu.memory_space<vmem>>, vector<1x32x256xf32>
    %1 = vector.shape_cast %0 : vector<1x32x256xf32> to vector<32x256xf32>
    %cst = arith.constant dense<0.000000e+00> : vector<32xf32>
    %2 = vector.multi_reduction <add>, %1, %cst [1] : vector<32x256xf32> to vector<32xf32>
    %3 = vector.shape_cast %2 : vector<32xf32> to vector<32x1xf32>
    %cst_2 = arith.constant 3.906250e-03 : f32
    %4 = vector.broadcast %cst_2 : f32 to vector<32x1xf32>
    %5 = arith.mulf %3, %4 : vector<32x1xf32>
    %6 = vector.shape_cast %0 : vector<1x32x256xf32> to vector<32x256xf32>
    %cst_3 = arith.constant dense<0xFF800000> : vector<32xf32>
    %7 = vector.multi_reduction <maximumf>, %6, %cst_3 [1] : vector<32x256xf32> to vector<32xf32>
    %8 = vector.shape_cast %7 : vector<32xf32> to vector<32x1xf32>
    %9 = tpu.concatenate %5, %8 in 1 : vector<32x1xf32>, vector<32x1xf32> -> vector<32x2xf32>
    %c0_4 = arith.constant 0 : index
    %c0_5 = arith.constant 0 : index
    %10 = vector.load %arg2[%c0_4, %c0_5] : memref<2x32xf32, #tpu.memory_space<vmem>>, vector<2x32xf32>
    %cst_6 = arith.constant dense<0.000000e+00> : vector<2x2xf32>
    %11 = tpu.matmul %10, %9, %cst_6 {dimension_numbers = #tpu.dot_dimension_numbers<[1], [0], [0], [1], [0, 0, 1, 1], [], []>} : vector<2x32xf32>, vector<32x2xf32>, vector<2x2xf32> -> vector<2x2xf32>
    %c0_7 = arith.constant 0 : index
    %c0_8 = arith.constant 0 : index
    %12 = vector.load %arg3[%c0_7, %c0_8] : memref<2x1xf32, #tpu.memory_space<vmem>>, vector<2x1xf32>
    %13 = vector.broadcast %12 : vector<2x1xf32> to vector<2x2xf32>
    %14 = arith.addf %11, %13 : vector<2x2xf32>
    %cst_9 = arith.constant 0.000000e+00 : f32
    %15 = vector.broadcast %cst_9 : f32 to vector<2x2xf32>
    %16 = arith.maximumf %14, %15 : vector<2x2xf32>
    %c0_10 = arith.constant 0 : index
    %c0_11 = arith.constant 0 : index
    %17 = vector.load %arg4[%c0_10, %c0_11] : memref<32x2xf32, #tpu.memory_space<vmem>>, vector<32x2xf32>
    %cst_12 = arith.constant dense<0.000000e+00> : vector<32x2xf32>
    %18 = tpu.matmul %17, %16, %cst_12 {dimension_numbers = #tpu.dot_dimension_numbers<[1], [0], [0], [1], [0, 0, 1, 1], [], []>} : vector<32x2xf32>, vector<2x2xf32>, vector<32x2xf32> -> vector<32x2xf32>
    %c0_13 = arith.constant 0 : index
    %c0_14 = arith.constant 0 : index
    %19 = vector.load %arg5[%c0_13, %c0_14] : memref<32x1xf32, #tpu.memory_space<vmem>>, vector<32x1xf32>
    %20 = vector.broadcast %19 : vector<32x1xf32> to vector<32x2xf32>
    %21 = arith.addf %18, %20 : vector<32x2xf32>
    %22 = vector.extract_strided_slice %21 {offsets = [0, 0], sizes = [32, 1], strides = [1, 1]} : vector<32x2xf32> to vector<32x1xf32>
    %23 = vector.extract_strided_slice %21 {offsets = [0, 1], sizes = [32, 1], strides = [1, 1]} : vector<32x2xf32> to vector<32x1xf32>
    %24 = arith.addf %22, %23 : vector<32x1xf32>
    %25 = arith.negf %24 : vector<32x1xf32>
    %26 = math.exp %25 : vector<32x1xf32>
    %cst_15 = arith.constant 1.000000e+00 : f32
    %27 = vector.broadcast %cst_15 : f32 to vector<32x1xf32>
    %28 = arith.addf %27, %26 : vector<32x1xf32>
    %29 = arith.divf %27, %28 : vector<32x1xf32>
    %30 = vector.shape_cast %0 : vector<1x32x256xf32> to vector<32x256xf32>
    %31 = vector.broadcast %29 : vector<32x1xf32> to vector<32x256xf32>
    %32 = arith.mulf %30, %31 : vector<32x256xf32>
    %cst_16 = arith.constant dense<0.000000e+00> : vector<256xf32>
    %33 = vector.multi_reduction <add>, %32, %cst_16 [0] : vector<32x256xf32> to vector<256xf32>
    %34 = vector.shape_cast %33 : vector<256xf32> to vector<1x256xf32>
    %cst_17 = arith.constant 3.125000e-02 : f32
    %35 = vector.broadcast %cst_17 : f32 to vector<1x256xf32>
    %36 = arith.mulf %34, %35 : vector<1x256xf32>
    %cst_18 = arith.constant dense<0xFF800000> : vector<256xf32>
    %37 = vector.multi_reduction <maximumf>, %32, %cst_18 [0] : vector<32x256xf32> to vector<256xf32>
    %38 = vector.shape_cast %37 : vector<256xf32> to vector<1x256xf32>
    %c0_19 = arith.constant 0 : index
    %c0_20 = arith.constant 0 : index
    %39 = vector.load %arg6[%c0_19, %c0_20] : memref<9x256xf32, #tpu.memory_space<vmem>>, vector<9x256xf32>
    %c0_21 = arith.constant 0 : index
    %c0_22 = arith.constant 0 : index
    %40 = vector.load %arg7[%c0_21, %c0_22] : memref<9x256xf32, #tpu.memory_space<vmem>>, vector<9x256xf32>
    %cst_23 = arith.constant 0.000000e+00 : f32
    %41 = vector.broadcast %cst_23 : f32 to vector<1x256xf32>
    %c17_i32 = arith.constant 17 : i32
    %42 = tpu.dynamic_rotate %36 by %c17_i32 dim 1 : vector<1x256xf32>, i32 -> vector<1x256xf32>
    %c17_i32_24 = arith.constant 17 : i32
    %43 = tpu.dynamic_rotate %38 by %c17_i32_24 dim 1 : vector<1x256xf32>, i32 -> vector<1x256xf32>
    %44 = vector.extract_strided_slice %39 {offsets = [0, 0], sizes = [1, 256], strides = [1, 1]} : vector<9x256xf32> to vector<1x256xf32>
    %45 = arith.mulf %44, %42 : vector<1x256xf32>
    %46 = arith.addf %41, %45 : vector<1x256xf32>
    %47 = vector.extract_strided_slice %40 {offsets = [0, 0], sizes = [1, 256], strides = [1, 1]} : vector<9x256xf32> to vector<1x256xf32>
    %48 = arith.mulf %47, %43 : vector<1x256xf32>
    %49 = arith.addf %46, %48 : vector<1x256xf32>
    %c16_i32 = arith.constant 16 : i32
    %50 = tpu.dynamic_rotate %36 by %c16_i32 dim 1 : vector<1x256xf32>, i32 -> vector<1x256xf32>
    %c16_i32_25 = arith.constant 16 : i32
    %51 = tpu.dynamic_rotate %38 by %c16_i32_25 dim 1 : vector<1x256xf32>, i32 -> vector<1x256xf32>
    %52 = vector.extract_strided_slice %39 {offsets = [1, 0], sizes = [1, 256], strides = [1, 1]} : vector<9x256xf32> to vector<1x256xf32>
    %53 = arith.mulf %52, %50 : vector<1x256xf32>
    %54 = arith.addf %49, %53 : vector<1x256xf32>
    %55 = vector.extract_strided_slice %40 {offsets = [1, 0], sizes = [1, 256], strides = [1, 1]} : vector<9x256xf32> to vector<1x256xf32>
    %56 = arith.mulf %55, %51 : vector<1x256xf32>
    %57 = arith.addf %54, %56 : vector<1x256xf32>
    %c15_i32 = arith.constant 15 : i32
    %58 = tpu.dynamic_rotate %36 by %c15_i32 dim 1 : vector<1x256xf32>, i32 -> vector<1x256xf32>
    %c15_i32_26 = arith.constant 15 : i32
    %59 = tpu.dynamic_rotate %38 by %c15_i32_26 dim 1 : vector<1x256xf32>, i32 -> vector<1x256xf32>
    %60 = vector.extract_strided_slice %39 {offsets = [2, 0], sizes = [1, 256], strides = [1, 1]} : vector<9x256xf32> to vector<1x256xf32>
    %61 = arith.mulf %60, %58 : vector<1x256xf32>
    %62 = arith.addf %57, %61 : vector<1x256xf32>
    %63 = vector.extract_strided_slice %40 {offsets = [2, 0], sizes = [1, 256], strides = [1, 1]} : vector<9x256xf32> to vector<1x256xf32>
    %64 = arith.mulf %63, %59 : vector<1x256xf32>
    %65 = arith.addf %62, %64 : vector<1x256xf32>
    %c1_i32 = arith.constant 1 : i32
    %66 = tpu.dynamic_rotate %36 by %c1_i32 dim 1 : vector<1x256xf32>, i32 -> vector<1x256xf32>
    %c1_i32_27 = arith.constant 1 : i32
    %67 = tpu.dynamic_rotate %38 by %c1_i32_27 dim 1 : vector<1x256xf32>, i32 -> vector<1x256xf32>
    %68 = vector.extract_strided_slice %39 {offsets = [3, 0], sizes = [1, 256], strides = [1, 1]} : vector<9x256xf32> to vector<1x256xf32>
    %69 = arith.mulf %68, %66 : vector<1x256xf32>
    %70 = arith.addf %65, %69 : vector<1x256xf32>
    %71 = vector.extract_strided_slice %40 {offsets = [3, 0], sizes = [1, 256], strides = [1, 1]} : vector<9x256xf32> to vector<1x256xf32>
    %72 = arith.mulf %71, %67 : vector<1x256xf32>
    %73 = arith.addf %70, %72 : vector<1x256xf32>
    %74 = vector.extract_strided_slice %39 {offsets = [4, 0], sizes = [1, 256], strides = [1, 1]} : vector<9x256xf32> to vector<1x256xf32>
    %75 = arith.mulf %74, %36 : vector<1x256xf32>
    %76 = arith.addf %73, %75 : vector<1x256xf32>
    %77 = vector.extract_strided_slice %40 {offsets = [4, 0], sizes = [1, 256], strides = [1, 1]} : vector<9x256xf32> to vector<1x256xf32>
    %78 = arith.mulf %77, %38 : vector<1x256xf32>
    %79 = arith.addf %76, %78 : vector<1x256xf32>
    %c255_i32 = arith.constant 255 : i32
    %80 = tpu.dynamic_rotate %36 by %c255_i32 dim 1 : vector<1x256xf32>, i32 -> vector<1x256xf32>
    %c255_i32_28 = arith.constant 255 : i32
    %81 = tpu.dynamic_rotate %38 by %c255_i32_28 dim 1 : vector<1x256xf32>, i32 -> vector<1x256xf32>
    %82 = vector.extract_strided_slice %39 {offsets = [5, 0], sizes = [1, 256], strides = [1, 1]} : vector<9x256xf32> to vector<1x256xf32>
    %83 = arith.mulf %82, %80 : vector<1x256xf32>
    %84 = arith.addf %79, %83 : vector<1x256xf32>
    %85 = vector.extract_strided_slice %40 {offsets = [5, 0], sizes = [1, 256], strides = [1, 1]} : vector<9x256xf32> to vector<1x256xf32>
    %86 = arith.mulf %85, %81 : vector<1x256xf32>
    %87 = arith.addf %84, %86 : vector<1x256xf32>
    %c241_i32 = arith.constant 241 : i32
    %88 = tpu.dynamic_rotate %36 by %c241_i32 dim 1 : vector<1x256xf32>, i32 -> vector<1x256xf32>
    %c241_i32_29 = arith.constant 241 : i32
    %89 = tpu.dynamic_rotate %38 by %c241_i32_29 dim 1 : vector<1x256xf32>, i32 -> vector<1x256xf32>
    %90 = vector.extract_strided_slice %39 {offsets = [6, 0], sizes = [1, 256], strides = [1, 1]} : vector<9x256xf32> to vector<1x256xf32>
    %91 = arith.mulf %90, %88 : vector<1x256xf32>
    %92 = arith.addf %87, %91 : vector<1x256xf32>
    %93 = vector.extract_strided_slice %40 {offsets = [6, 0], sizes = [1, 256], strides = [1, 1]} : vector<9x256xf32> to vector<1x256xf32>
    %94 = arith.mulf %93, %89 : vector<1x256xf32>
    %95 = arith.addf %92, %94 : vector<1x256xf32>
    %c240_i32 = arith.constant 240 : i32
    %96 = tpu.dynamic_rotate %36 by %c240_i32 dim 1 : vector<1x256xf32>, i32 -> vector<1x256xf32>
    %c240_i32_30 = arith.constant 240 : i32
    %97 = tpu.dynamic_rotate %38 by %c240_i32_30 dim 1 : vector<1x256xf32>, i32 -> vector<1x256xf32>
    %98 = vector.extract_strided_slice %39 {offsets = [7, 0], sizes = [1, 256], strides = [1, 1]} : vector<9x256xf32> to vector<1x256xf32>
    %99 = arith.mulf %98, %96 : vector<1x256xf32>
    %100 = arith.addf %95, %99 : vector<1x256xf32>
    %101 = vector.extract_strided_slice %40 {offsets = [7, 0], sizes = [1, 256], strides = [1, 1]} : vector<9x256xf32> to vector<1x256xf32>
    %102 = arith.mulf %101, %97 : vector<1x256xf32>
    %103 = arith.addf %100, %102 : vector<1x256xf32>
    %c239_i32 = arith.constant 239 : i32
    %104 = tpu.dynamic_rotate %36 by %c239_i32 dim 1 : vector<1x256xf32>, i32 -> vector<1x256xf32>
    %c239_i32_31 = arith.constant 239 : i32
    %105 = tpu.dynamic_rotate %38 by %c239_i32_31 dim 1 : vector<1x256xf32>, i32 -> vector<1x256xf32>
    %106 = vector.extract_strided_slice %39 {offsets = [8, 0], sizes = [1, 256], strides = [1, 1]} : vector<9x256xf32> to vector<1x256xf32>
    %107 = arith.mulf %106, %104 : vector<1x256xf32>
    %108 = arith.addf %103, %107 : vector<1x256xf32>
    %109 = vector.extract_strided_slice %40 {offsets = [8, 0], sizes = [1, 256], strides = [1, 1]} : vector<9x256xf32> to vector<1x256xf32>
    %110 = arith.mulf %109, %105 : vector<1x256xf32>
    %111 = arith.addf %108, %110 : vector<1x256xf32>
    %c0_32 = arith.constant 0 : index
    %112 = memref.load %arg8[%c0_32] : memref<1xf32, #tpu.memory_space<smem>>
    %113 = vector.broadcast %112 : f32 to vector<1x256xf32>
    %114 = arith.addf %111, %113 : vector<1x256xf32>
    %115 = arith.negf %114 : vector<1x256xf32>
    %116 = math.exp %115 : vector<1x256xf32>
    %cst_33 = arith.constant 1.000000e+00 : f32
    %117 = vector.broadcast %cst_33 : f32 to vector<1x256xf32>
    %118 = arith.addf %117, %116 : vector<1x256xf32>
    %119 = arith.divf %117, %118 : vector<1x256xf32>
    %120 = vector.shape_cast %0 : vector<1x32x256xf32> to vector<32x256xf32>
    %121 = vector.broadcast %29 : vector<32x1xf32> to vector<32x256xf32>
    %122 = arith.mulf %120, %121 : vector<32x256xf32>
    %123 = vector.broadcast %119 : vector<1x256xf32> to vector<32x256xf32>
    %124 = arith.mulf %122, %123 : vector<32x256xf32>
    %c0_34 = arith.constant 0 : index
    %c0_35 = arith.constant 0 : index
    %c0_36 = arith.constant 0 : index
    %125 = vector.load %arg9[%c0_34, %c0_35, %c0_36] : memref<1x32x256xf32, #tpu.memory_space<vmem>>, vector<1x32x256xf32>
    %126 = vector.shape_cast %125 : vector<1x32x256xf32> to vector<32x256xf32>
    %127 = vector.shape_cast %124 : vector<32x256xf32> to vector<1x32x256xf32>
    tpu.vector_store %arg9[%c0_34, %c0_35, %c0_36], %127 {strides = array<i32>} : memref<1x32x256xf32, #tpu.memory_space<vmem>>, vector<1x32x256xf32>,
    return
  }
  func.func @transform_0(%arg0: i32) -> (i32, i32, i32) {
    %c0_i32 = arith.constant 0 : i32
    %c0_i32_0 = arith.constant 0 : i32
    %c0_i32_1 = arith.constant 0 : i32
    return %arg0, %c0_i32, %c0_i32_0 : i32, i32, i32
  }
  func.func @transform_1(%arg0: i32) -> (i32, i32) {
    %c0_i32 = arith.constant 0 : i32
    %c0_i32_0 = arith.constant 0 : i32
    %c0_i32_1 = arith.constant 0 : i32
    return %c0_i32, %c0_i32_0 : i32, i32
  }
  func.func @transform_2(%arg0: i32) -> (i32, i32) {
    %c0_i32 = arith.constant 0 : i32
    %c0_i32_0 = arith.constant 0 : i32
    %c0_i32_1 = arith.constant 0 : i32
    return %c0_i32, %c0_i32_0 : i32, i32
  }
  func.func @transform_3(%arg0: i32) -> (i32, i32) {
    %c0_i32 = arith.constant 0 : i32
    %c0_i32_0 = arith.constant 0 : i32
    %c0_i32_1 = arith.constant 0 : i32
    return %c0_i32, %c0_i32_0 : i32, i32
  }
  func.func @transform_4(%arg0: i32) -> (i32, i32) {
    %c0_i32 = arith.constant 0 : i32
    %c0_i32_0 = arith.constant 0 : i32
    %c0_i32_1 = arith.constant 0 : i32
    return %c0_i32, %c0_i32_0 : i32, i32
  }
  func.func @transform_5(%arg0: i32) -> (i32, i32) {
    %c0_i32 = arith.constant 0 : i32
    %c0_i32_0 = arith.constant 0 : i32
    %c0_i32_1 = arith.constant 0 : i32
    return %c0_i32, %c0_i32_0 : i32, i32
  }
  func.func @transform_6(%arg0: i32) -> (i32, i32) {
    %c0_i32 = arith.constant 0 : i32
    %c0_i32_0 = arith.constant 0 : i32
    %c0_i32_1 = arith.constant 0 : i32
    return %c0_i32, %c0_i32_0 : i32, i32
  }
  func.func @transform_7(%arg0: i32) -> i32 {
    %c0_i32 = arith.constant 0 : i32
    %c0_i32_0 = arith.constant 0 : i32
    return %c0_i32 : i32
  }
  func.func @transform_8(%arg0: i32) -> (i32, i32, i32) {
    %c0_i32 = arith.constant 0 : i32
    %c0_i32_0 = arith.constant 0 : i32
    %c0_i32_1 = arith.constant 0 : i32
    return %arg0, %c0_i32, %c0_i32_0 : i32, i32, i32
  }
}

</mosaic_0001>

<llo_original>
// kernel: tpu_custom_call.1
$region0: #{tpu_custom_call.1}
  #allocation0 [shape = 'u32[]', space=smem, size = 0x4, offset = 0x4, fixed_abs, tag = 'smem constant byte address 0x4 - core index']
  #allocation1 [shape = 'u32[144,128]{1,0:T(1,128)}', space=vmem, size = 0x12000, scoped, tag = 'internal scratch']
  #allocation2 [shape = 'f32[1]{0:T(128)S(6)}', space=smem, size = 0x200, scoped, tag = 'scoped memory for tpu_custom_call.1']
  %s0 = inlined_call_operand.hbm [shape: f32[2,32,256], index: 0, kind: input, shape index: {}]
  %s1 = inlined_call_operand.vmem [shape: f32[2,32], index: 1, kind: input, shape index: {}]
  %s2 = inlined_call_operand.vmem [shape: f32[2,1], index: 2, kind: input, shape index: {}]
  %s3 = inlined_call_operand.vmem [shape: f32[32,2], index: 3, kind: input, shape index: {}]
  %s4 = inlined_call_operand.vmem [shape: f32[32,1], index: 4, kind: input, shape index: {}]
  %s5 = inlined_call_operand.vmem [shape: f32[9,256], index: 5, kind: input, shape index: {}]
  %s6 = inlined_call_operand.vmem [shape: f32[9,256], index: 6, kind: input, shape index: {}]
  %s7 = inlined_call_operand.<no memory space> [shape: f32[1], index: 7, kind: input, shape index: {}]
  %s8 = inlined_call_operand.hbm [shape: f32[2,32,256], index: 8, kind: output, shape index: {}]
  %s9 = sld [smem:[#allocation0]]
  $region69: #{tpu_custom_call.1} parent=0
    _
  %s11 = ssub.s32 1, %s9
  %s12 = scalar_select 0, %s11, %s9
  %13 = sst [smem:[#allocation2]] %s7
  $region1: #{tpu_custom_call.1} parent=0
    #allocation3 [shape = 'u8[65536]{0}', space=vmem, size = 0x10000, scoped, tag = 'input window, operand 0']
    #allocation4 [shape = 's32[2]{0}', space=sflag, size = 0x8, scoped, tag = 'scoped memory for tpu_custom_call.1']
    #allocation5 [shape = 's32[2]{0}', space=sflag, size = 0x8, scoped, tag = 'scoped memory for tpu_custom_call.1']
    #allocation6 [shape = 'u8[65536]{0}', space=vmem, size = 0x10000, scoped, tag = 'output window, operand 0']
    %14 = vsyncpa [#allocation4], 0
    %s15 = scalar_lea.sflag [#allocation4], 1
    %16 = vsyncpa %s15, 0
    %17 = vsyncpa [#allocation5], 0
    %s18 = scalar_lea.sflag [#allocation5], 1
    %19 = vsyncpa %s18, 0
    loop: start=0, step=1, limit=4
    $region2: #{tpu_custom_call.1} parent=1 // loop_pre_header
      _
    $region3: #{tpu_custom_call.1} parent=1 // loop_header
      %s21 = sphi 0, %s25
      %p22 = scmp.ge.s32.totalorder %s21, 4
      %s31 = sphi 0, %s33
      %s34 = sphi 0, %s31
      %s35 = sphi 0, %s34
      %s51 = sphi 0, %s35
      %s55 = sphi 0, %s55
      %s57 = sphi 0, %s55
      %s58 = sphi 0, %s57
      %s72 = sphi 0, %s58
      %s76 = sphi 0, %s76
      %s78 = sphi 0, %s76
      %s79 = sphi 0, %s78
      %s93 = sphi 0, %s79
      %s97 = sphi 0, %s97
      %s99 = sphi 0, %s97
      %s100 = sphi 0, %s99
      %s114 = sphi 0, %s100
      %s118 = sphi 0, %s118
      %s120 = sphi 0, %s118
      %s121 = sphi 0, %s120
      %s135 = sphi 0, %s121
      %s139 = sphi 0, %s139
      %s141 = sphi 0, %s139
      %s142 = sphi 0, %s141
      %s156 = sphi 0, %s142
      %s160 = sphi 0, %s160
      %s162 = sphi 0, %s160
      %s163 = sphi 0, %s162
      %s177 = sphi 0, %s163
      %s181 = sphi 0, %s181
      %s183 = sphi 0, %s181
      %s184 = sphi 0, %s183
      %s198 = sphi 0, %s184
      %s204 = sphi 0, %s206
      %s207 = sphi 0, %s204
      %s208 = sphi 0, %s207
      %s224 = sphi 0, %s208
    $region4: #{tpu_custom_call.1} parent=1 // loop_header_branch
      %24 = sbr.rel (%p22) target = $region8
    $region5: #{tpu_custom_call.1} parent=1 // loop_body
      %s26 = ssub.s32 %s21, 1
      %s27 = ssub.s32 %s21, 2
      %s28 = sadd.s32 %s21, 1
      %s29 = ssub.s32 %s21, %s28
      %p30 = scmp.eq.s32.totalorder %s29, 0
      %s32 = sadd.s32 %s31, 1
      %s33 = scalar_select %p30, %s31, %s32
      %p36 = pneg %p30
      %p37 = scmp.eq.s32.totalorder %s21, 1
      %p38 = por %p36, %p37
      %p39 = scmp.ne.s32.totalorder %s31, %s34
      %p40 = scmp.eq.s32.totalorder %s21, 0
      %p41 = por %p39, %p40
      %p42 = scmp.ne.s32.totalorder %s31, %s34
      %p43 = scmp.eq.s32.totalorder %s26, 1
      %p44 = por %p42, %p43
      %p45 = scmp.ne.s32.totalorder %s34, %s35
      %p46 = scmp.eq.s32.totalorder %s26, 0
      %p47 = por %p45, %p46
      %p48 = scmp.ne.s32.totalorder %s34, %s35
      %p49 = scmp.eq.s32.totalorder %s27, 1
      %p50 = por %p48, %p49
      %p52 = scmp.ne.s32.totalorder %s35, %s51
      %p53 = scmp.eq.s32.totalorder %s27, 0
      %p54 = por %p52, %p53
      %s56 = sadd.s32 %s55, 1
      %p59 = scmp.eq.s32.totalorder %s21, 1
      %p60 = scmp.ne.s32.totalorder %s55, %s57
      %p61 = scmp.eq.s32.totalorder %s21, 0
      %p62 = por %p60, %p61
      %p63 = scmp.ne.s32.totalorder %s55, %s57
      %p64 = scmp.eq.s32.totalorder %s26, 1
      %p65 = por %p63, %p64
      %p66 = scmp.ne.s32.totalorder %s57, %s58
      %p67 = scmp.eq.s32.totalorder %s26, 0
      %p68 = por %p66, %p67
      %p69 = scmp.ne.s32.totalorder %s57, %s58
      %p70 = scmp.eq.s32.totalorder %s27, 1
      %p71 = por %p69, %p70
      %p73 = scmp.ne.s32.totalorder %s58, %s72
      %p74 = scmp.eq.s32.totalorder %s27, 0
      %p75 = por %p73, %p74
      %s77 = sadd.s32 %s76, 1
      %p80 = scmp.eq.s32.totalorder %s21, 1
      %p81 = scmp.ne.s32.totalorder %s76, %s78
      %p82 = scmp.eq.s32.totalorder %s21, 0
      %p83 = por %p81, %p82
      %p84 = scmp.ne.s32.totalorder %s76, %s78
      %p85 = scmp.eq.s32.totalorder %s26, 1
      %p86 = por %p84, %p85
      %p87 = scmp.ne.s32.totalorder %s78, %s79
      %p88 = scmp.eq.s32.totalorder %s26, 0
      %p89 = por %p87, %p88
      %p90 = scmp.ne.s32.totalorder %s78, %s79
      %p91 = scmp.eq.s32.totalorder %s27, 1
      %p92 = por %p90, %p91
      %p94 = scmp.ne.s32.totalorder %s79, %s93
      %p95 = scmp.eq.s32.totalorder %s27, 0
      %p96 = por %p94, %p95
      %s98 = sadd.s32 %s97, 1
      %p101 = scmp.eq.s32.totalorder %s21, 1
      %p102 = scmp.ne.s32.totalorder %s97, %s99
      %p103 = scmp.eq.s32.totalorder %s21, 0
      %p104 = por %p102, %p103
      %p105 = scmp.ne.s32.totalorder %s97, %s99
      %p106 = scmp.eq.s32.totalorder %s26, 1
      %p107 = por %p105, %p106
      %p108 = scmp.ne.s32.totalorder %s99, %s100
      %p109 = scmp.eq.s32.totalorder %s26, 0
      %p110 = por %p108, %p109
      %p111 = scmp.ne.s32.totalorder %s99, %s100
      %p112 = scmp.eq.s32.totalorder %s27, 1
      %p113 = por %p111, %p112
      %p115 = scmp.ne.s32.totalorder %s100, %s114
      %p116 = scmp.eq.s32.totalorder %s27, 0
      %p117 = por %p115, %p116
      %s119 = sadd.s32 %s118, 1
      %p122 = scmp.eq.s32.totalorder %s21, 1
      %p123 = scmp.ne.s32.totalorder %s118, %s120
      %p124 = scmp.eq.s32.totalorder %s21, 0
      %p125 = por %p123, %p124
      %p126 = scmp.ne.s32.totalorder %s118, %s120
      %p127 = scmp.eq.s32.totalorder %s26, 1
      %p128 = por %p126, %p127
      %p129 = scmp.ne.s32.totalorder %s120, %s121
      %p130 = scmp.eq.s32.totalorder %s26, 0
      %p131 = por %p129, %p130
      %p132 = scmp.ne.s32.totalorder %s120, %s121
      %p133 = scmp.eq.s32.totalorder %s27, 1
      %p134 = por %p132, %p133
      %p136 = scmp.ne.s32.totalorder %s121, %s135
      %p137 = scmp.eq.s32.totalorder %s27, 0
      %p138 = por %p136, %p137
      %s140 = sadd.s32 %s139, 1
      %p143 = scmp.eq.s32.totalorder %s21, 1
      %p144 = scmp.ne.s32.totalorder %s139, %s141
      %p145 = scmp.eq.s32.totalorder %s21, 0
      %p146 = por %p144, %p145
      %p147 = scmp.ne.s32.totalorder %s139, %s141
      %p148 = scmp.eq.s32.totalorder %s26, 1
      %p149 = por %p147, %p148
      %p150 = scmp.ne.s32.totalorder %s141, %s142
      %p151 = scmp.eq.s32.totalorder %s26, 0
      %p152 = por %p150, %p151
      %p153 = scmp.ne.s32.totalorder %s141, %s142
      %p154 = scmp.eq.s32.totalorder %s27, 1
      %p155 = por %p153, %p154
      %p157 = scmp.ne.s32.totalorder %s142, %s156
      %p158 = scmp.eq.s32.totalorder %s27, 0
      %p159 = por %p157, %p158
      %s161 = sadd.s32 %s160, 1
      %p164 = scmp.eq.s32.totalorder %s21, 1
      %p165 = scmp.ne.s32.totalorder %s160, %s162
      %p166 = scmp.eq.s32.totalorder %s21, 0
      %p167 = por %p165, %p166
      %p168 = scmp.ne.s32.totalorder %s160, %s162
      %p169 = scmp.eq.s32.totalorder %s26, 1
      %p170 = por %p168, %p169
      %p171 = scmp.ne.s32.totalorder %s162, %s163
      %p172 = scmp.eq.s32.totalorder %s26, 0
      %p173 = por %p171, %p172
      %p174 = scmp.ne.s32.totalorder %s162, %s163
      %p175 = scmp.eq.s32.totalorder %s27, 1
      %p176 = por %p174, %p175
      %p178 = scmp.ne.s32.totalorder %s163, %s177
      %p179 = scmp.eq.s32.totalorder %s27, 0
      %p180 = por %p178, %p179
      %s182 = sadd.s32 %s181, 1
      %p185 = scmp.eq.s32.totalorder %s21, 1
      %p186 = scmp.ne.s32.totalorder %s181, %s183
      %p187 = scmp.eq.s32.totalorder %s21, 0
      %p188 = por %p186, %p187
      %p189 = scmp.ne.s32.totalorder %s181, %s183
      %p190 = scmp.eq.s32.totalorder %s26, 1
      %p191 = por %p189, %p190
      %p192 = scmp.ne.s32.totalorder %s183, %s184
      %p193 = scmp.eq.s32.totalorder %s26, 0
      %p194 = por %p192, %p193
      %p195 = scmp.ne.s32.totalorder %s183, %s184
      %p196 = scmp.eq.s32.totalorder %s27, 1
      %p197 = por %p195, %p196
      %p199 = scmp.ne.s32.totalorder %s184, %s198
      %p200 = scmp.eq.s32.totalorder %s27, 0
      %p201 = por %p199, %p200
      %s202 = ssub.s32 %s21, %s28
      %p203 = scmp.eq.s32.totalorder %s202, 0
      %s205 = sadd.s32 %s204, 1
      %s206 = scalar_select %p203, %s204, %s205
      %p209 = pneg %p203
      %p210 = scmp.eq.s32.totalorder %s21, 1
      %p211 = por %p209, %p210
      %p212 = scmp.ne.s32.totalorder %s204, %s207
      %p213 = scmp.eq.s32.totalorder %s21, 0
      %p214 = por %p212, %p213
      %p215 = scmp.ne.s32.totalorder %s204, %s207
      %p216 = scmp.eq.s32.totalorder %s26, 1
      %p217 = por %p215, %p216
      %p218 = scmp.ne.s32.totalorder %s207, %s208
      %p219 = scmp.eq.s32.totalorder %s26, 0
      %p220 = por %p218, %p219
      %p221 = scmp.ne.s32.totalorder %s207, %s208
      %p222 = scmp.eq.s32.totalorder %s27, 1
      %p223 = por %p221, %p222
      %p225 = scmp.ne.s32.totalorder %s208, %s224
      %p226 = scmp.eq.s32.totalorder %s27, 0
      %p227 = por %p225, %p226
      %p228 = scmp.le.s32.totalorder 1, %s21
      %p229 = scmp.lt.s32.totalorder %s21, 3
      %p230 = pnand %p228, %p229
      %p231 = pneg %p230
      // Predicated region
      $region9: #{tpu_custom_call.1} parent=5 // pred_check
        _
      $region10: #{tpu_custom_call.1} parent=5 // pred_check_branch
        %233 = sbr.rel (%p230) target = $region12
      $region11: #{tpu_custom_call.1} parent=5 // pred_region
        %s234 = ssub.s32 %s21, 1
        // Predicated region
        $region13: #{tpu_custom_call.1} parent=11 // pred_check
          %p235 = pneg %p68
        $region14: #{tpu_custom_call.1} parent=11 // pred_check_branch
          %237 = sbr.rel (%p235) target = $region16
        $region15: #{tpu_custom_call.1} parent=11 // pred_region
          _
        $region16: #{tpu_custom_call.1} parent=11 // pred_fallthru
          _
        // Predicated region
        $region17: #{tpu_custom_call.1} parent=11 // pred_check
          %p238 = pneg %p89
        $region18: #{tpu_custom_call.1} parent=11 // pred_check_branch
          %240 = sbr.rel (%p238) target = $region20
        $region19: #{tpu_custom_call.1} parent=11 // pred_region
          _
        $region20: #{tpu_custom_call.1} parent=11 // pred_fallthru
          _
        // Predicated region
        $region21: #{tpu_custom_call.1} parent=11 // pred_check
          %p241 = pneg %p110
        $region22: #{tpu_custom_call.1} parent=11 // pred_check_branch
          %243 = sbr.rel (%p241) target = $region24
        $region23: #{tpu_custom_call.1} parent=11 // pred_region
          _
        $region24: #{tpu_custom_call.1} parent=11 // pred_fallthru
          _
        // Predicated region
        $region25: #{tpu_custom_call.1} parent=11 // pred_check
          %p244 = pneg %p131
        $region26: #{tpu_custom_call.1} parent=11 // pred_check_branch
          %246 = sbr.rel (%p244) target = $region28
        $region27: #{tpu_custom_call.1} parent=11 // pred_region
          _
        $region28: #{tpu_custom_call.1} parent=11 // pred_fallthru
          _
        // Predicated region
        $region29: #{tpu_custom_call.1} parent=11 // pred_check
          %p247 = pneg %p152
        $region30: #{tpu_custom_call.1} parent=11 // pred_check_branch
          %249 = sbr.rel (%p247) target = $region32
        $region31: #{tpu_custom_call.1} parent=11 // pred_region
          _
        $region32: #{tpu_custom_call.1} parent=11 // pred_fallthru
          _
        // Predicated region
        $region33: #{tpu_custom_call.1} parent=11 // pred_check
          %p250 = pneg %p173
        $region34: #{tpu_custom_call.1} parent=11 // pred_check_branch
          %252 = sbr.rel (%p250) target = $region36
        $region35: #{tpu_custom_call.1} parent=11 // pred_region
          _
        $region36: #{tpu_custom_call.1} parent=11 // pred_fallthru
          _
        // Predicated region
        $region37: #{tpu_custom_call.1} parent=11 // pred_check
          %p253 = pneg %p194
        $region38: #{tpu_custom_call.1} parent=11 // pred_check_branch
          %255 = sbr.rel (%p253) target = $region40
        $region39: #{tpu_custom_call.1} parent=11 // pred_region
          _
        $region40: #{tpu_custom_call.1} parent=11 // pred_fallthru
          _
      $region12: #{tpu_custom_call.1} parent=5 // pred_fallthru
        _
      %p256 = scmp.lt.s32.totalorder %s21, 2
      // Predicated region
      $region41: #{tpu_custom_call.1} parent=5 // pred_check
        %p257 = pneg %p256
      $region42: #{tpu_custom_call.1} parent=5 // pred_check_branch
        %259 = sbr.rel (%p257) target = $region44
      $region43: #{tpu_custom_call.1} parent=5 // pred_region
        // Predicated region
        $region45: #{tpu_custom_call.1} parent=43 // pred_check
          %p260 = pneg %p41
        $region46: #{tpu_custom_call.1} parent=43 // pred_check_branch
          %262 = sbr.rel (%p260) target = $region48
        $region47: #{tpu_custom_call.1} parent=43 // pred_region
          %s263 = sand.u32 %s31, 1
          %s264 = scalar_lea.sflag [#allocation4], %s263
          %s265 = sand.u32 %s31, 1
          %s266 = smul.addr %s265, 64
          %s267 = scalar_lea.vmem [#allocation3], %s266
          %s269 = ssub.s32 1024, 1024
          %270 = vsyncadd %s264, %s269
          %s271 = smul.addr %s21, 8
          %s272 = smul.addr %s271, 128
          %s273 = scalar_lea.hbm %s0, %s272
          %s274 = sshll.u32 %s267, 4
          %s275 = int_to_ptr.vmem [resolvable:$true] %s274
          %280 = dma.hbm_to_vmem [thread:$0]  %s273, 1024, %s275, %s264, 256, 256, 16
        $region48: #{tpu_custom_call.1} parent=43 // pred_fallthru
          _
      $region44: #{tpu_custom_call.1} parent=5 // pred_fallthru
        _
      %p281 = scmp.le.s32.totalorder 1, %s21
      %p282 = scmp.lt.s32.totalorder %s21, 3
      %p283 = pnand %p281, %p282
      %p284 = pneg %p283
      // Predicated region
      $region49: #{tpu_custom_call.1} parent=5 // pred_check
        _
      $region50: #{tpu_custom_call.1} parent=5 // pred_check_branch
        %286 = sbr.rel (%p283) target = $region52
      $region51: #{tpu_custom_call.1} parent=5 // pred_region
        %s287 = ssub.s32 %s21, 1
        %s288 = sand.u32 %s34, 1
        %s289 = scalar_lea.sflag [#allocation4], %s288
        %s290 = sand.u32 %s34, 1
        %s291 = smul.addr %s290, 64
        %s292 = scalar_lea.vmem [#allocation3], %s291
        // Predicated region
        $region53: #{tpu_custom_call.1} parent=51 // pred_check
          %p293 = pneg %p47
        $region54: #{tpu_custom_call.1} parent=51 // pred_check_branch
          %295 = sbr.rel (%p293) target = $region56
        $region55: #{tpu_custom_call.1} parent=51 // pred_region
          %296 = dma.done %s289, 1024
        $region56: #{tpu_custom_call.1} parent=51 // pred_fallthru
          _
        %s297 = sand.u32 %s34, 1
        %s298 = scalar_lea.sflag [#allocation4], %s297
        %s299 = sand.u32 %s34, 1
        %s300 = smul.addr %s299, 64
        %s301 = scalar_lea.vmem [#allocation3], %s300
        %p302 = pneg %p47
        %p303 = pneg %p44
        %p304 = pneg %p68
        %p305 = pneg %p65
        %p306 = pneg %p89
        %p307 = pneg %p86
        %p308 = pneg %p110
        %p309 = pneg %p107
        %p310 = pneg %p131
        %p311 = pneg %p128
        %p312 = pneg %p152
        %p313 = pneg %p149
        %p314 = pneg %p173
        %p315 = pneg %p170
        %p316 = pneg %p194
        %p317 = pneg %p191
        %p318 = pneg %p220
        %p319 = pneg %p217
        %s320 = sand.u32 %s207, 1
        %s321 = scalar_lea.sflag [#allocation5], %s320
        %s322 = sand.u32 %s207, 1
        %s323 = smul.addr %s322, 64
        %s324 = scalar_lea.vmem [#allocation6], %s323
        %v325 = vld [vmem:[%s292] sm:$0xff]
        %v326 = vld [vmem:[%s292 + $0x8] sm:$0xff]
        %v327 = vld [vmem:[%s292 + $0x10] sm:$0xff]
        %v328 = vld [vmem:[%s292 + $0x18] sm:$0xff]
        %v329 = vld [vmem:[%s292 + $0x20] sm:$0xff]
        %v330 = vld [vmem:[%s292 + $0x28] sm:$0xff]
        %v331 = vld [vmem:[%s292 + $0x30] sm:$0xff]
        %v332 = vld [vmem:[%s292 + $0x38] sm:$0xff]
        %v333 = vadd.f32 %v325, %v326
        %334 = vadd.xlane.f32.xlu0 %v333
        %v335 = vpop.xlane.xlu0 %334
        %v336 = vadd.f32 %v327, %v328
        %337 = vadd.xlane.f32.xlu0 %v336
        %v338 = vpop.xlane.xlu0 %337
        %v339 = vadd.f32 %v329, %v330
        %340 = vadd.xlane.f32.xlu0 %v339
        %v341 = vpop.xlane.xlu0 %340
        %v342 = vadd.f32 %v331, %v332
        %343 = vadd.xlane.f32.xlu0 %v342
        %v344 = vpop.xlane.xlu0 %343
        %v345 = vmul.f32 %v335, 0.00390625
        %v346 = vmul.f32 %v338, 0.00390625
        %v347 = vmul.f32 %v341, 0.00390625
        %v348 = vmul.f32 %v344, 0.00390625
        %v349 = vmax.f32 %v325, %v326
        %350 = vmax.xlane.f32.xlu0 %v349
        %v351 = vpop.xlane.xlu0 %350
        %v352 = vmax.f32 %v327, %v328
        %353 = vmax.xlane.f32.xlu0 %v352
        %v354 = vpop.xlane.xlu0 %353
        %v355 = vmax.f32 %v329, %v330
        %356 = vmax.xlane.f32.xlu0 %v355
        %v357 = vpop.xlane.xlu0 %356
        %v358 = vmax.f32 %v331, %v332
        %359 = vmax.xlane.f32.xlu0 %v358
        %v360 = vpop.xlane.xlu0 %359
        %vm361 = vcmask 7168
        %v362 = vsel %vm361, %v345, %v351
        %v363 = vsel %vm361, %v346, %v354
        %v364 = vsel %vm361, %v347, %v357
        %v365 = vsel %vm361, %v348, %v360
        %v366 = vld [vmem:[%s1] sm:$0x3]
        %v367 = vld [vmem:[%s2] sm:$0x3]
        %369 = vset.pattern.permute.xlu0 0
        %370 = vperm.xlu0 %369, %v367
        %v371 = vpop.permute.xlu0 %370
        %vm373 = vcmask 261120
        %v375 = vsel %vm373, %v366, 0
        %377 = vmatprep.subr.mxu0 0.0
        %378 = vmatpush1.msra.mxu0 0.0
        %379 = vmatprep.subr.mxu0 0.0
        %380 = vmatpush1.msra.mxu0 0.0
        %381 = vmatprep.subr.mxu0 0.0
        %382 = vmatpush1.msra.mxu0 0.0
        %383 = vmatprep.subr.mxu0 0.0
        %384 = vmatpush1.msra.mxu0 0.0
        %385 = vmatprep.subr.mxu0 0.0
        %386 = vmatpush1.msra.mxu0 0.0
        %387 = vmatprep.subr.mxu0 0.0
        %388 = vmatpush1.msra.mxu0 0.0
        %389 = vmatprep.subr.mxu0 0.0
        %390 = vmatpush1.msra.mxu0 0.0
        %391 = vmatprep.subr.mxu0 0.0
        %392 = vmatpush1.msra.mxu0 0.0
        %393 = vmatprep.subr.mxu0 0.0
        %394 = vmatpush1.msra.mxu0 0.0
        %395 = vmatprep.subr.mxu0 0.0
        %396 = vmatpush1.msra.mxu0 0.0
        %397 = vmatprep.subr.mxu0 0.0
        %398 = vmatpush1.msra.mxu0 0.0
        %399 = vmatprep.subr.mxu0 0.0
        %400 = vmatpush1.msra.mxu0 0.0
        %401 = vmatprep.subr.mxu0 0.0
        %402 = vmatpush1.msra.mxu0 %v365
        %403 = vmatprep.subr.mxu0 0.0
        %404 = vmatpush1.msra.mxu0 %v364
        %405 = vmatprep.subr.mxu0 0.0
        %406 = vmatpush1.msra.mxu0 %v363
        %407 = vmatprep.subr.mxu0 0.0
        %408 = vmatpush1.msra.mxu0 %v362
        %409 = vmatprep.subr.mxu0 0.0
        %410 = vmatpush2.msra.mxu0 0.0
        %411 = vmatprep.subr.mxu0 0.0
        %412 = vmatpush2.msra.mxu0 0.0
        %413 = vmatprep.subr.mxu0 0.0
        %414 = vmatpush2.msra.mxu0 0.0
        %415 = vmatprep.subr.mxu0 0.0
        %416 = vmatpush2.msra.mxu0 0.0
        %417 = vmatprep.subr.mxu0 0.0
        %418 = vmatpush2.msra.mxu0 0.0
        %419 = vmatprep.subr.mxu0 0.0
        %420 = vmatpush2.msra.mxu0 0.0
        %421 = vmatprep.subr.mxu0 0.0
        %422 = vmatpush2.msra.mxu0 0.0
        %423 = vmatprep.subr.mxu0 0.0
        %424 = vmatpush2.msra.mxu0 0.0
        %425 = vmatprep.subr.mxu0 0.0
        %426 = vmatpush2.msra.mxu0 0.0
        %427 = vmatprep.subr.mxu0 0.0
        %428 = vmatpush2.msra.mxu0 0.0
        %429 = vmatprep.subr.mxu0 0.0
        %430 = vmatpush2.msra.mxu0 0.0
        %431 = vmatprep.subr.mxu0 0.0
        %432 = vmatpush2.msra.mxu0 0.0
        %433 = vmatprep.subr.mxu0 0.0
        %434 = vmatpush2.msra.mxu0 0.0
        %435 = vmatprep.subr.mxu0 0.0
        %436 = vmatpush2.msra.mxu0 0.0
        %437 = vmatprep.subr.mxu0 0.0
        %438 = vmatpush2.msra.mxu0 0.0
        %439 = vmatprep.subr.mxu0 0.0
        %440 = vmatpush2.msra.mxu0 0.0
        %441 = vmatprep.mubr.f32.mxu0 0.0
        %442 = vmatmul.mubr.f32.gmra.mxu0 %v375
        %v443 = vpop.f32.mrf.mxu0
        %v444 = vadd.f32 %v371, %v443
        %v445 = vpop.f32.mrf.mxu0
        %446 = vdwg.mxu0
        %v447 = vmax.f32 %v444, 0.0
        %v448 = vld [vmem:[%s3] sm:$0xff]
        %v449 = vld [vmem:[%s3 + $0x8] sm:$0xff]
        %v450 = vld [vmem:[%s3 + $0x10] sm:$0xff]
        %v451 = vld [vmem:[%s3 + $0x18] sm:$0xff]
        %v452 = vld [vmem:[%s4] sm:$0xff]
        %v453 = vld [vmem:[%s4 + $0x8] sm:$0xff]
        %v454 = vld [vmem:[%s4 + $0x10] sm:$0xff]
        %v455 = vld [vmem:[%s4 + $0x18] sm:$0xff]
        %457 = vset.pattern.permute.xlu0 0
        %458 = vperm.xlu0 %457, %v452
        %v459 = vpop.permute.xlu0 %458
        %462 = vset.pattern.permute.xlu0 0
        %463 = vperm.xlu0 %462, %v453
        %v464 = vpop.permute.xlu0 %463
        %467 = vset.pattern.permute.xlu0 0
        %468 = vperm.xlu0 %467, %v454
        %v469 = vpop.permute.xlu0 %468
        %472 = vset.pattern.permute.xlu0 0
        %473 = vperm.xlu0 %472, %v455
        %v474 = vpop.permute.xlu0 %473
        %vm476 = vcmask 15360
        %v478 = vsel %vm476, %v448, 0
        %v481 = vsel %vm476, %v449, 0
        %v484 = vsel %vm476, %v450, 0
        %v487 = vsel %vm476, %v451, 0
        %vm489 = vcmask 1041408
        %v491 = vsel %vm489, %v447, 0
        %493 = vmatprep.subr.mxu0 0.0
        %494 = vmatpush1.msra.mxu0 0.0
        %495 = vmatprep.subr.mxu0 0.0
        %496 = vmatpush1.msra.mxu0 0.0
        %497 = vmatprep.subr.mxu0 0.0
        %498 = vmatpush1.msra.mxu0 0.0
        %499 = vmatprep.subr.mxu0 0.0
        %500 = vmatpush1.msra.mxu0 0.0
        %501 = vmatprep.subr.mxu0 0.0
        %502 = vmatpush1.msra.mxu0 0.0
        %503 = vmatprep.subr.mxu0 0.0
        %504 = vmatpush1.msra.mxu0 0.0
        %505 = vmatprep.subr.mxu0 0.0
        %506 = vmatpush1.msra.mxu0 0.0
        %507 = vmatprep.subr.mxu0 0.0
        %508 = vmatpush1.msra.mxu0 0.0
        %509 = vmatprep.subr.mxu0 0.0
        %510 = vmatpush1.msra.mxu0 0.0
        %511 = vmatprep.subr.mxu0 0.0
        %512 = vmatpush1.msra.mxu0 0.0
        %513 = vmatprep.subr.mxu0 0.0
        %514 = vmatpush1.msra.mxu0 0.0
        %515 = vmatprep.subr.mxu0 0.0
        %516 = vmatpush1.msra.mxu0 0.0
        %517 = vmatprep.subr.mxu0 0.0
        %518 = vmatpush1.msra.mxu0 0.0
        %519 = vmatprep.subr.mxu0 0.0
        %520 = vmatpush1.msra.mxu0 0.0
        %521 = vmatprep.subr.mxu0 0.0
        %522 = vmatpush1.msra.mxu0 0.0
        %523 = vmatprep.subr.mxu0 0.0
        %524 = vmatpush1.msra.mxu0 %v491
        %525 = vmatprep.subr.mxu0 0.0
        %526 = vmatpush2.msra.mxu0 0.0
        %527 = vmatprep.subr.mxu0 0.0
        %528 = vmatpush2.msra.mxu0 0.0
        %529 = vmatprep.subr.mxu0 0.0
        %530 = vmatpush2.msra.mxu0 0.0
        %531 = vmatprep.subr.mxu0 0.0
        %532 = vmatpush2.msra.mxu0 0.0
        %533 = vmatprep.subr.mxu0 0.0
        %534 = vmatpush2.msra.mxu0 0.0
        %535 = vmatprep.subr.mxu0 0.0
        %536 = vmatpush2.msra.mxu0 0.0
        %537 = vmatprep.subr.mxu0 0.0
        %538 = vmatpush2.msra.mxu0 0.0
        %539 = vmatprep.subr.mxu0 0.0
        %540 = vmatpush2.msra.mxu0 0.0
        %541 = vmatprep.subr.mxu0 0.0
        %542 = vmatpush2.msra.mxu0 0.0
        %543 = vmatprep.subr.mxu0 0.0
        %544 = vmatpush2.msra.mxu0 0.0
        %545 = vmatprep.subr.mxu0 0.0
        %546 = vmatpush2.msra.mxu0 0.0
        %547 = vmatprep.subr.mxu0 0.0
        %548 = vmatpush2.msra.mxu0 0.0
        %549 = vmatprep.subr.mxu0 0.0
        %550 = vmatpush2.msra.mxu0 0.0
        %551 = vmatprep.subr.mxu0 0.0
        %552 = vmatpush2.msra.mxu0 0.0
        %553 = vmatprep.subr.mxu0 0.0
        %554 = vmatpush2.msra.mxu0 0.0
        %555 = vmatprep.subr.mxu0 0.0
        %556 = vmatpush2.msra.mxu0 0.0
        %557 = vmatprep.mubr.f32.mxu0 0.0
        %558 = vmatmul.mubr.f32.gmra.mxu0 %v478
        %v559 = vpop.f32.mrf.mxu0
        %v560 = vadd.f32 %v459, %v559
        %v561 = vpop.f32.mrf.mxu0
        %562 = vmatprep.mubr.f32.mxu0 0.0
        %563 = vmatmul.mubr.f32.gmra.mxu0 %v481
        %v564 = vpop.f32.mrf.mxu0
        %v565 = vadd.f32 %v464, %v564
        %v566 = vpop.f32.mrf.mxu0
        %567 = vmatprep.mubr.f32.mxu0 0.0
        %568 = vmatmul.mubr.f32.gmra.mxu0 %v484
        %v569 = vpop.f32.mrf.mxu0
        %v570 = vadd.f32 %v469, %v569
        %v571 = vpop.f32.mrf.mxu0
        %572 = vmatprep.mubr.f32.mxu0 0.0
        %573 = vmatmul.mubr.f32.gmra.mxu0 %v487
        %v574 = vpop.f32.mrf.mxu0
        %v575 = vadd.f32 %v474, %v574
        %v576 = vpop.f32.mrf.mxu0
        %577 = vdwg.mxu0
        %582 = vrot.lane.b32.xlu0 %v560, 127
        %v583 = vpop.permute.xlu0 %582
        %584 = vrot.lane.b32.xlu0 %v565, 127
        %v585 = vpop.permute.xlu0 %584
        %586 = vrot.lane.b32.xlu0 %v570, 127
        %v587 = vpop.permute.xlu0 %586
        %588 = vrot.lane.b32.xlu0 %v575, 127
        %v589 = vpop.permute.xlu0 %588
        %v594 = vadd.f32 %v560, %v583
        %v595 = vadd.f32 %v565, %v585
        %v596 = vadd.f32 %v570, %v587
        %v597 = vadd.f32 %v575, %v589
        %v598 = vxor.u32 %v594, 2147483648
        %v599 = vxor.u32 %v595, 2147483648
        %v600 = vxor.u32 %v596, 2147483648
        %v601 = vxor.u32 %v597, 2147483648
        %v602 = vmul.f32 %v598, 1.442695
        %v603 = vpow.pop %v602
        %v604 = vmul.f32 %v599, 1.442695
        %v605 = vpow.pop %v604
        %v606 = vmul.f32 %v600, 1.442695
        %v607 = vpow.pop %v606
        %v608 = vmul.f32 %v601, 1.442695
        %v609 = vpow.pop %v608
        %v610 = vadd.f32 %v603, 1.0
        %v611 = vadd.f32 %v605, 1.0
        %v612 = vadd.f32 %v607, 1.0
        %v613 = vadd.f32 %v609, 1.0
        %v614 = vrcp.pop %v610
        %v615 = vmul.f32 1.0, %v614
        %v616 = vrcp.pop %v611
        %v617 = vmul.f32 1.0, %v616
        %v618 = vrcp.pop %v612
        %v619 = vmul.f32 1.0, %v618
        %v620 = vrcp.pop %v613
        %v621 = vmul.f32 1.0, %v620
        %623 = vset.pattern.permute.xlu0 0
        %624 = vperm.xlu0 %623, %v615
        %v625 = vpop.permute.xlu0 %624
        %628 = vset.pattern.permute.xlu0 0
        %629 = vperm.xlu0 %628, %v617
        %v630 = vpop.permute.xlu0 %629
        %633 = vset.pattern.permute.xlu0 0
        %634 = vperm.xlu0 %633, %v619
        %v635 = vpop.permute.xlu0 %634
        %638 = vset.pattern.permute.xlu0 0
        %639 = vperm.xlu0 %638, %v621
        %v640 = vpop.permute.xlu0 %639
        %v642 = vmul.f32 %v325, %v625
        %v643 = vmul.f32 %v326, %v625
        %v644 = vmul.f32 %v327, %v630
        %v645 = vmul.f32 %v328, %v630
        %v646 = vmul.f32 %v329, %v635
        %v647 = vmul.f32 %v330, %v635
        %v648 = vmul.f32 %v331, %v640
        %v649 = vmul.f32 %v332, %v640
        %v650 = vadd.f32 %v642, %v644
        %v651 = vadd.f32 %v650, %v646
        %v652 = vadd.f32 %v651, %v648
        %v653 = vrot.slane %v652, 4
        %v654 = vadd.f32 %v652, %v653
        %v655 = vrot.slane %v654, 2
        %v656 = vadd.f32 %v654, %v655
        %v657 = vrot.slane %v656, 1
        %v658 = vadd.f32 %v656, %v657
        %v659 = vadd.f32 %v643, %v645
        %v660 = vadd.f32 %v659, %v647
        %v661 = vadd.f32 %v660, %v649
        %v662 = vrot.slane %v661, 4
        %v663 = vadd.f32 %v661, %v662
        %v664 = vrot.slane %v663, 2
        %v665 = vadd.f32 %v663, %v664
        %v666 = vrot.slane %v665, 1
        %v667 = vadd.f32 %v665, %v666
        %v668 = vmul.f32 %v658, 0.03125
        %v669 = vmul.f32 %v667, 0.03125
        %v670 = vmax.f32 %v642, %v646
        %v671 = vmax.f32 %v644, %v648
        %v672 = vmax.f32 %v670, %v671
        %v673 = vrot.slane %v672, 4
        %v674 = vmax.f32 %v672, %v673
        %v675 = vrot.slane %v674, 2
        %v676 = vmax.f32 %v674, %v675
        %v677 = vrot.slane %v676, 1
        %v678 = vmax.f32 %v676, %v677
        %v679 = vmax.f32 %v643, %v647
        %v680 = vmax.f32 %v645, %v649
        %v681 = vmax.f32 %v679, %v680
        %v682 = vrot.slane %v681, 4
        %v683 = vmax.f32 %v681, %v682
        %v684 = vrot.slane %v683, 2
        %v685 = vmax.f32 %v683, %v684
        %v686 = vrot.slane %v685, 1
        %v687 = vmax.f32 %v685, %v686
        %v688 = vld [vmem:[%s5] sm:$0xff]
        %v689 = vld [vmem:[%s5 + $0x8] sm:$0xff]
        %v690 = vld [vmem:[%s5 + $0x10] sm:$0x1]
        %v691 = vld [vmem:[%s5 + $0x18] sm:$0x1]
        %v692 = vld [vmem:[%s6] sm:$0xff]
        %v693 = vld [vmem:[%s6 + $0x8] sm:$0xff]
        %v694 = vld [vmem:[%s6 + $0x10] sm:$0x1]
        %v695 = vld [vmem:[%s6 + $0x18] sm:$0x1]
        %696 = vrot.lane.b32.xlu0 %v668, 17
        %v697 = vpop.permute.xlu0 %696
        %698 = vrot.lane.b32.xlu0 %v669, 17
        %v699 = vpop.permute.xlu0 %698
        %v700 = vlaneseq
        %v701 = vand.u32 %v700, 127
        %vm702 = vcmp.lt.s32.totalorder %v701, 17
        %v703 = vsel %vm702, %v697, %v699
        %v704 = vsel %vm702, %v699, %v697
        %705 = vrot.lane.b32.xlu0 %v678, 17
        %v706 = vpop.permute.xlu0 %705
        %707 = vrot.lane.b32.xlu0 %v687, 17
        %v708 = vpop.permute.xlu0 %707
        %v709 = vsel %vm702, %v706, %v708
        %v710 = vsel %vm702, %v708, %v706
        %v711 = vmul.f32 %v688, %v704
        %v712 = vmul.f32 %v689, %v703
        %v713 = vadd.f32 %v711, 0.0
        %v714 = vadd.f32 %v712, 0.0
        %v715 = vmul.f32 %v692, %v710
        %v716 = vmul.f32 %v693, %v709
        %v717 = vadd.f32 %v713, %v715
        %v718 = vadd.f32 %v714, %v716
        %719 = vrot.lane.b32.xlu0 %v668, 16
        %v720 = vpop.permute.xlu0 %719
        %721 = vrot.lane.b32.xlu0 %v669, 16
        %v722 = vpop.permute.xlu0 %721
        %vm723 = vcmp.lt.s32.totalorder %v701, 16
        %v724 = vsel %vm723, %v720, %v722
        %v725 = vsel %vm723, %v722, %v720
        %726 = vrot.lane.b32.xlu0 %v678, 16
        %v727 = vpop.permute.xlu0 %726
        %728 = vrot.lane.b32.xlu0 %v687, 16
        %v729 = vpop.permute.xlu0 %728
        %v730 = vsel %vm723, %v727, %v729
        %v731 = vsel %vm723, %v729, %v727
        %v734 = vrot.slane %v725, 7
        %v735 = vrot.slane %v724, 7
        %v738 = vmul.f32 %v688, %v734
        %v739 = vmul.f32 %v689, %v735
        %v742 = vrot.slane %v738, 1
        %v743 = vrot.slane %v739, 1
        %v746 = vadd.f32 %v717, %v742
        %v747 = vadd.f32 %v718, %v743
        %v750 = vrot.slane %v731, 7
        %v751 = vrot.slane %v730, 7
        %v754 = vmul.f32 %v692, %v750
        %v755 = vmul.f32 %v693, %v751
        %v758 = vrot.slane %v754, 1
        %v759 = vrot.slane %v755, 1
        %v762 = vadd.f32 %v746, %v758
        %v763 = vadd.f32 %v747, %v759
        %764 = vrot.lane.b32.xlu0 %v668, 15
        %v765 = vpop.permute.xlu0 %764
        %766 = vrot.lane.b32.xlu0 %v669, 15
        %v767 = vpop.permute.xlu0 %766
        %vm768 = vcmp.lt.s32.totalorder %v701, 15
        %v769 = vsel %vm768, %v765, %v767
        %v770 = vsel %vm768, %v767, %v765
        %771 = vrot.lane.b32.xlu0 %v678, 15
        %v772 = vpop.permute.xlu0 %771
        %773 = vrot.lane.b32.xlu0 %v687, 15
        %v774 = vpop.permute.xlu0 %773
        %v775 = vsel %vm768, %v772, %v774
        %v776 = vsel %vm768, %v774, %v772
        %v779 = vrot.slane %v770, 6
        %v780 = vrot.slane %v769, 6
        %v783 = vmul.f32 %v688, %v779
        %v784 = vmul.f32 %v689, %v780
        %v787 = vrot.slane %v783, 2
        %v788 = vrot.slane %v784, 2
        %v791 = vadd.f32 %v762, %v787
        %v792 = vadd.f32 %v763, %v788
        %v795 = vrot.slane %v776, 6
        %v796 = vrot.slane %v775, 6
        %v799 = vmul.f32 %v692, %v795
        %v800 = vmul.f32 %v693, %v796
        %v803 = vrot.slane %v799, 2
        %v804 = vrot.slane %v800, 2
        %v807 = vadd.f32 %v791, %v803
        %v808 = vadd.f32 %v792, %v804
        %809 = vrot.lane.b32.xlu0 %v668, 1
        %v810 = vpop.permute.xlu0 %809
        %811 = vrot.lane.b32.xlu0 %v669, 1
        %v812 = vpop.permute.xlu0 %811
        %vm813 = vcmp.lt.s32.totalorder %v701, 1
        %v814 = vsel %vm813, %v810, %v812
        %v815 = vsel %vm813, %v812, %v810
        %816 = vrot.lane.b32.xlu0 %v678, 1
        %v817 = vpop.permute.xlu0 %816
        %818 = vrot.lane.b32.xlu0 %v687, 1
        %v819 = vpop.permute.xlu0 %818
        %v820 = vsel %vm813, %v817, %v819
        %v821 = vsel %vm813, %v819, %v817
        %v824 = vrot.slane %v815, 5
        %v825 = vrot.slane %v814, 5
        %v828 = vmul.f32 %v688, %v824
        %v829 = vmul.f32 %v689, %v825
        %v832 = vrot.slane %v828, 3
        %v833 = vrot.slane %v829, 3
        %v836 = vadd.f32 %v807, %v832
        %v837 = vadd.f32 %v808, %v833
        %v840 = vrot.slane %v821, 5
        %v841 = vrot.slane %v820, 5
        %v844 = vmul.f32 %v692, %v840
        %v845 = vmul.f32 %v693, %v841
        %v848 = vrot.slane %v844, 3
        %v849 = vrot.slane %v845, 3
        %v852 = vadd.f32 %v836, %v848
        %v853 = vadd.f32 %v837, %v849
        %v854 = vmul.f32 %v688, %v668
        %v855 = vmul.f32 %v689, %v669
        %v858 = vrot.slane %v854, 4
        %v859 = vrot.slane %v855, 4
        %v862 = vadd.f32 %v852, %v858
        %v863 = vadd.f32 %v853, %v859
        %v864 = vmul.f32 %v692, %v678
        %v865 = vmul.f32 %v693, %v687
        %v868 = vrot.slane %v864, 4
        %v869 = vrot.slane %v865, 4
        %v872 = vadd.f32 %v862, %v868
        %v873 = vadd.f32 %v863, %v869
        %874 = vrot.lane.b32.xlu0 %v668, 127
        %v875 = vpop.permute.xlu0 %874
        %876 = vrot.lane.b32.xlu0 %v669, 127
        %v877 = vpop.permute.xlu0 %876
        %vm878 = vcmp.lt.s32.totalorder %v701, 127
        %v879 = vsel %vm878, %v875, %v877
        %v880 = vsel %vm878, %v877, %v875
        %881 = vrot.lane.b32.xlu0 %v678, 127
        %v882 = vpop.permute.xlu0 %881
        %883 = vrot.lane.b32.xlu0 %v687, 127
        %v884 = vpop.permute.xlu0 %883
        %v885 = vsel %vm878, %v882, %v884
        %v886 = vsel %vm878, %v884, %v882
        %v889 = vrot.slane %v879, 3
        %v890 = vrot.slane %v880, 3
        %v893 = vmul.f32 %v688, %v889
        %v894 = vmul.f32 %v689, %v890
        %v897 = vrot.slane %v893, 5
        %v898 = vrot.slane %v894, 5
        %v901 = vadd.f32 %v872, %v897
        %v902 = vadd.f32 %v873, %v898
        %v905 = vrot.slane %v885, 3
        %v906 = vrot.slane %v886, 3
        %v909 = vmul.f32 %v692, %v905
        %v910 = vmul.f32 %v693, %v906
        %v913 = vrot.slane %v909, 5
        %v914 = vrot.slane %v910, 5
        %v917 = vadd.f32 %v901, %v913
        %v918 = vadd.f32 %v902, %v914
        %919 = vrot.lane.b32.xlu0 %v668, 113
        %v920 = vpop.permute.xlu0 %919
        %921 = vrot.lane.b32.xlu0 %v669, 113
        %v922 = vpop.permute.xlu0 %921
        %vm923 = vcmp.lt.s32.totalorder %v701, 113
        %v924 = vsel %vm923, %v920, %v922
        %v925 = vsel %vm923, %v922, %v920
        %926 = vrot.lane.b32.xlu0 %v678, 113
        %v927 = vpop.permute.xlu0 %926
        %928 = vrot.lane.b32.xlu0 %v687, 113
        %v929 = vpop.permute.xlu0 %928
        %v930 = vsel %vm923, %v927, %v929
        %v931 = vsel %vm923, %v929, %v927
        %v934 = vrot.slane %v924, 2
        %v935 = vrot.slane %v925, 2
        %v938 = vmul.f32 %v688, %v934
        %v939 = vmul.f32 %v689, %v935
        %v942 = vrot.slane %v938, 6
        %v943 = vrot.slane %v939, 6
        %v946 = vadd.f32 %v917, %v942
        %v947 = vadd.f32 %v918, %v943
        %v950 = vrot.slane %v930, 2
        %v951 = vrot.slane %v931, 2
        %v954 = vmul.f32 %v692, %v950
        %v955 = vmul.f32 %v693, %v951
        %v958 = vrot.slane %v954, 6
        %v959 = vrot.slane %v955, 6
        %v962 = vadd.f32 %v946, %v958
        %v963 = vadd.f32 %v947, %v959
        %964 = vrot.lane.b32.xlu0 %v668, 112
        %v965 = vpop.permute.xlu0 %964
        %966 = vrot.lane.b32.xlu0 %v669, 112
        %v967 = vpop.permute.xlu0 %966
        %vm968 = vcmp.lt.s32.totalorder %v701, 112
        %v969 = vsel %vm968, %v965, %v967
        %v970 = vsel %vm968, %v967, %v965
        %971 = vrot.lane.b32.xlu0 %v678, 112
        %v972 = vpop.permute.xlu0 %971
        %973 = vrot.lane.b32.xlu0 %v687, 112
        %v974 = vpop.permute.xlu0 %973
        %v975 = vsel %vm968, %v972, %v974
        %v976 = vsel %vm968, %v974, %v972
        %v979 = vrot.slane %v969, 1
        %v980 = vrot.slane %v970, 1
        %v983 = vmul.f32 %v688, %v979
        %v984 = vmul.f32 %v689, %v980
        %v987 = vrot.slane %v983, 7
        %v988 = vrot.slane %v984, 7
        %v991 = vadd.f32 %v962, %v987
        %v992 = vadd.f32 %v963, %v988
        %v995 = vrot.slane %v975, 1
        %v996 = vrot.slane %v976, 1
        %v999 = vmul.f32 %v692, %v995
        %v1000 = vmul.f32 %v693, %v996
        %v1003 = vrot.slane %v999, 7
        %v1004 = vrot.slane %v1000, 7
        %v1007 = vadd.f32 %v991, %v1003
        %v1008 = vadd.f32 %v992, %v1004
        %1009 = vrot.lane.b32.xlu0 %v668, 111
        %v1010 = vpop.permute.xlu0 %1009
        %1011 = vrot.lane.b32.xlu0 %v669, 111
        %v1012 = vpop.permute.xlu0 %1011
        %vm1013 = vcmp.lt.s32.totalorder %v701, 111
        %v1014 = vsel %vm1013, %v1010, %v1012
        %v1015 = vsel %vm1013, %v1012, %v1010
        %1016 = vrot.lane.b32.xlu0 %v678, 111
        %v1017 = vpop.permute.xlu0 %1016
        %1018 = vrot.lane.b32.xlu0 %v687, 111
        %v1019 = vpop.permute.xlu0 %1018
        %v1020 = vsel %vm1013, %v1017, %v1019
        %v1021 = vsel %vm1013, %v1019, %v1017
        %v1022 = vmul.f32 %v690, %v1014
        %v1023 = vmul.f32 %v691, %v1015
        %v1024 = vadd.f32 %v1007, %v1022
        %v1025 = vadd.f32 %v1008, %v1023
        %v1026 = vmul.f32 %v694, %v1020
        %v1027 = vmul.f32 %v695, %v1021
        %v1028 = vadd.f32 %v1024, %v1026
        %v1029 = vadd.f32 %v1025, %v1027
        %s1030 = sld [smem:[#allocation2]]
        %v1031 = vstv %s1030
        %v1032 = vadd.f32 %v1028, %v1031
        %v1033 = vadd.f32 %v1029, %v1031
        %v1034 = vxor.u32 %v1032, 2147483648
        %v1035 = vxor.u32 %v1033, 2147483648
        %v1036 = vmul.f32 %v1034, 1.442695
        %v1037 = vpow.pop %v1036
        %v1038 = vmul.f32 %v1035, 1.442695
        %v1039 = vpow.pop %v1038
        %v1040 = vadd.f32 %v1037, 1.0
        %v1041 = vadd.f32 %v1039, 1.0
        %v1042 = vrcp.pop %v1040
        %v1043 = vmul.f32 1.0, %v1042
        %v1044 = vrcp.pop %v1041
        %v1045 = vmul.f32 1.0, %v1044
        %v1046 = vlaneseq
        %v1047 = vshrl.u32 %v1046, 7
        %v1048 = vsub.s32 0, %v1047
        %v1049 = vrot.slane %v1043, %v1048
        %v1050 = vlaneseq
        %v1051 = vshrl.u32 %v1050, 7
        %v1052 = vsub.s32 0, %v1051
        %v1053 = vrot.slane %v1045, %v1052
        %v1054 = vmul.f32 %v642, %v1049
        %v1055 = vmul.f32 %v643, %v1053
        %v1056 = vmul.f32 %v644, %v1049
        %v1057 = vmul.f32 %v645, %v1053
        %v1058 = vmul.f32 %v646, %v1049
        %v1059 = vmul.f32 %v647, %v1053
        %v1060 = vmul.f32 %v648, %v1049
        %v1061 = vmul.f32 %v649, %v1053
        %1062 = vst [vmem:[%s324] sm:$0xff] %v1054
        %1063 = vst [vmem:[%s324 + $0x8] sm:$0xff] %v1055
        %1064 = vst [vmem:[%s324 + $0x10] sm:$0xff] %v1056
        %1065 = vst [vmem:[%s324 + $0x18] sm:$0xff] %v1057
        %1066 = vst [vmem:[%s324 + $0x20] sm:$0xff] %v1058
        %1067 = vst [vmem:[%s324 + $0x28] sm:$0xff] %v1059
        %1068 = vst [vmem:[%s324 + $0x30] sm:$0xff] %v1060
        %1069 = vst [vmem:[%s324 + $0x38] sm:$0xff] %v1061
        %s1070 = sand.u32 %s207, 1
        %s1071 = scalar_lea.sflag [#allocation5], %s1070
        %s1072 = sand.u32 %s207, 1
        %s1073 = smul.addr %s1072, 64
        %s1074 = scalar_lea.vmem [#allocation6], %s1073
        // Predicated region
        $region57: #{tpu_custom_call.1} parent=51 // pred_check
          %p1075 = pneg %p217
        $region58: #{tpu_custom_call.1} parent=51 // pred_check_branch
          %1077 = sbr.rel (%p1075) target = $region60
        $region59: #{tpu_custom_call.1} parent=51 // pred_region
          %s1079 = ssub.s32 1024, 1024
          %1080 = vsyncadd %s1071, %s1079
          %s1081 = smul.addr %s26, 8
          %s1082 = smul.addr %s1081, 128
          %s1083 = scalar_lea.hbm %s8, %s1082
          %s1084 = sshll.u32 %s1074, 4
          %s1085 = int_to_ptr.vmem [resolvable:$true] %s1084
          %1090 = dma.vmem_to_hbm [thread:$0]  %s1085, 1024, %s1083, %s1071, 256, 256, 16
        $region60: #{tpu_custom_call.1} parent=51 // pred_fallthru
          _
      $region52: #{tpu_custom_call.1} parent=5 // pred_fallthru
        _
      %p1091 = scmp.le.s32.totalorder 2, %s21
      // Predicated region
      $region61: #{tpu_custom_call.1} parent=5 // pred_check
        %p1092 = pneg %p1091
      $region62: #{tpu_custom_call.1} parent=5 // pred_check_branch
        %1094 = sbr.rel (%p1092) target = $region64
      $region63: #{tpu_custom_call.1} parent=5 // pred_region
        %s1095 = ssub.s32 %s21, 2
        // Predicated region
        $region65: #{tpu_custom_call.1} parent=63 // pred_check
          %p1096 = pneg %p223
        $region66: #{tpu_custom_call.1} parent=63 // pred_check_branch
          %1098 = sbr.rel (%p1096) target = $region68
        $region67: #{tpu_custom_call.1} parent=63 // pred_region
          %s1099 = sand.u32 %s208, 1
          %s1100 = scalar_lea.sflag [#allocation5], %s1099
          %s1101 = sand.u32 %s208, 1
          %s1102 = smul.addr %s1101, 64
          %s1103 = scalar_lea.vmem [#allocation6], %s1102
          %1104 = dma.done %s1100, 1024
        $region68: #{tpu_custom_call.1} parent=63 // pred_fallthru
          _
      $region64: #{tpu_custom_call.1} parent=5 // pred_fallthru
        _
    $region6: #{tpu_custom_call.1} parent=1 // loop_footer
      %s25 = sadd.s32 1, %s21
    $region7: #{tpu_custom_call.1} parent=1 // loop_footer_branch
      %20 = sbr.rel target = $region3
    $region8: #{tpu_custom_call.1} parent=1 // loop_exit
      _
    %1105 = vsyncpa [#allocation4], 1
    %s1106 = scalar_lea.sflag [#allocation4], 1
    %1107 = vsyncpa %s1106, 1
    %1108 = vsyncpa [#allocation5], 1
    %s1109 = scalar_lea.sflag [#allocation5], 1
    %1110 = vsyncpa %s1109, 1

</llo_original>
